<compile_context>
chip_gen: v5e
topology: v5e:2x2
jax: 0.10.0
libtpu: 0.0.40
codegen_flags: <defaults>
</compile_context>

<pallas_src>
import functools

import jax
import jax.numpy as jnp
from jax import lax
from jax.experimental import pallas as pl
from jax.experimental.pallas import tpu as pltpu


# ----------------------------------------------------------------------------
# Per-generation sizing helpers
# ----------------------------------------------------------------------------
@functools.lru_cache(maxsize=None)
def _vmem_limit_bytes():
    """~55% of physical VMEM (128 MiB v5e/v6e, 64 MiB v7x), capped, leaving
    headroom for compiler scratch."""
    cap = 64 * 1024 * 1024
    try:
        cap = int(getattr(pltpu.get_tpu_info(), "vmem_capacity_bytes", cap))
    except Exception:
        pass
    return max(min(int(cap * 0.55), 96 * 1024 * 1024), 16 * 1024 * 1024)


def _pick_tile(dim, target, align):
    """Largest tile <= target that divides `dim` and is a multiple of `align`.

    Falls back to the full dimension (always a legal block shape); callers
    bound the resulting VMEM footprint explicitly so a tile-unfriendly dim
    cannot silently blow the budget."""
    if dim <= target:
        return dim
    t = (target // align) * align
    while t >= align:
        if dim % t == 0:
            return t
        t -= align
    return dim


# ----------------------------------------------------------------------------
# Linear projection kernels
# ----------------------------------------------------------------------------
def _linear_fullk_kernel(x_ref, w_ref, o_ref):
    o_ref[...] = jnp.dot(x_ref[...], w_ref[...],
                         preferred_element_type=jnp.float32).astype(o_ref.dtype)


def _linear_fullk_bias_kernel(x_ref, w_ref, b_ref, o_ref):
    acc = jnp.dot(x_ref[...], w_ref[...], preferred_element_type=jnp.float32)
    o_ref[...] = (acc + b_ref[...].astype(jnp.float32)).astype(o_ref.dtype)


def _linear_ktiled_kernel(x_ref, w_ref, o_ref, acc_ref):
    @pl.when(pl.program_id(2) == 0)
    def _():
        acc_ref[...] = jnp.zeros(acc_ref.shape, acc_ref.dtype)

    acc_ref[...] += jnp.dot(x_ref[...], w_ref[...],
                            preferred_element_type=jnp.float32)

    @pl.when(pl.program_id(2) == pl.num_programs(2) - 1)
    def _():
        o_ref[...] = acc_ref[...].astype(o_ref.dtype)


def _linear_ktiled_bias_kernel(x_ref, w_ref, b_ref, o_ref, acc_ref):
    @pl.when(pl.program_id(2) == 0)
    def _():
        acc_ref[...] = jnp.zeros(acc_ref.shape, acc_ref.dtype)

    acc_ref[...] += jnp.dot(x_ref[...], w_ref[...],
                            preferred_element_type=jnp.float32)

    @pl.when(pl.program_id(2) == pl.num_programs(2) - 1)
    def _():
        o_ref[...] = (acc_ref[...] + b_ref[...].astype(jnp.float32)
                      ).astype(o_ref.dtype)


def linear_pallas(x2d, w, bias=None, *,
                  tm_target=512, tn_target=512, tk_target=512):
    """y = x2d @ w (+ bias), f32 accumulation on the MXU.

    Tiling preference (all gated by the per-generation VMEM budget):
      1. weight-resident full-(K, N): each weight block constant across the
         grid -> DMA'd ~once (big win on v5e's weaker HBM),
      2. full-K reduction with lane-aligned N tile (no K grid axis, no f32
         accumulator scratch, tn=384/576 at OpenSora sizes),
      3. K-tiled reduction with an f32 VMEM accumulator (fallback).
    """
    M, K = x2d.shape
    K2, N = w.shape
    assert K == K2, (x2d.shape, w.shape)
    itemsize = x2d.dtype.itemsize
    budget = int(0.75 * _vmem_limit_bytes())

    def footprint(tm_, tn_, tk_, k_tiled):
        f = 2 * (tm_ * tk_ + tk_ * tn_ + tm_ * tn_) * itemsize
        if bias is not None:
            f += 2 * tn_ * itemsize
        if k_tiled:
            f += tm_ * tn_ * 4
        return f

    tm = _pick_tile(M, tm_target, 8)
    tn_aligned = _pick_tile(N, tn_target, 128)

    tn, tk, k_tiled = tn_aligned, K, False
    for tn_c in (N, tn_aligned):                 # weight-resident first, then tiled-N
        if footprint(tm, tn_c, K, False) <= budget:
            tn = tn_c
            break
    else:
        # Shrink tm (bounded) before giving up on the full-K reduction.
        for _ in range(8):
            nxt = _pick_tile(M, max(tm // 2, 8), 8)
            if nxt >= tm:
                break
            tm = nxt
            if footprint(tm, tn_aligned, K, False) <= budget:
                break
        if footprint(tm, tn_aligned, K, False) > budget:
            tk, k_tiled = _pick_tile(K, tk_target, 128), True

    cost = pl.CostEstimate(
        flops=int(2 * M * N * K), transcendentals=0,
        bytes_accessed=int((M * K + K * N + M * N) * itemsize))

    operands = [x2d, w]
    if k_tiled:
        grid = (M // tm, N // tn, K // tk)
        in_specs = [pl.BlockSpec((tm, tk), lambda i, j, k: (i, k)),
                    pl.BlockSpec((tk, tn), lambda i, j, k: (k, j))]
        out_spec = pl.BlockSpec((tm, tn), lambda i, j, k: (i, j))
        dims = ("parallel", "parallel", "arbitrary")
        scratch = [pltpu.VMEM((tm, tn), jnp.float32)]
        if bias is None:
            kernel = _linear_ktiled_kernel      # qkv_bias=False: no bias stream
        else:
            kernel = _linear_ktiled_bias_kernel
            in_specs.append(pl.BlockSpec((1, tn), lambda i, j, k: (0, j)))
            operands.append(bias.reshape(1, N))
    else:
        grid = (M // tm, N // tn)
        in_specs = [pl.BlockSpec((tm, K), lambda i, j: (i, 0)),
                    pl.BlockSpec((K, tn), lambda i, j: (0, j))]
        out_spec = pl.BlockSpec((tm, tn), lambda i, j: (i, j))
        dims = ("parallel", "parallel")
        scratch = []
        if bias is None:
            kernel = _linear_fullk_kernel
        else:
            kernel = _linear_fullk_bias_kernel
            in_specs.append(pl.BlockSpec((1, tn), lambda i, j: (0, j)))
            operands.append(bias.reshape(1, N))

    return pl.pallas_call(
        kernel,
        out_shape=jax.ShapeDtypeStruct((M, N), x2d.dtype),
        grid=grid,
        in_specs=in_specs,
        out_specs=out_spec,
        scratch_shapes=scratch,
        compiler_params=pltpu.CompilerParams(
            dimension_semantics=dims,
            vmem_limit_bytes=_vmem_limit_bytes()),
        cost_estimate=cost,
    )(*operands)


# ----------------------------------------------------------------------------
# Flash-style multi-head attention kernel (head-major, all heads per step)
# ----------------------------------------------------------------------------
def _flash_attn_kernel(q_ref, k_ref, v_ref, o_ref, m_ref, l_ref, acc_ref,
                       *, scale, num_heads):
    """Online-softmax step for one (bt, q-tile, kv-tile) grid point.

    Refs are head-major: q_ref (H, tq, D), k_ref/v_ref (H, tk, D),
    o_ref (H, tq, D).  Per-head slabs are addressed along the leading axis,
    so every load/store is lane-aligned (block last dim == D == full dim)."""
    ki = pl.program_id(2)
    H = num_heads

    @pl.when(ki == 0)
    def _():
        m_ref[...] = jnp.full(m_ref.shape, -jnp.inf, m_ref.dtype)
        l_ref[...] = jnp.zeros(l_ref.shape, l_ref.dtype)
        acc_ref[...] = jnp.zeros(acc_ref.shape, acc_ref.dtype)

    def head_step(h, carry):
        qh = q_ref[h] * scale            # fold 1/sqrt(D) into q (tq*D muls)
        kh = k_ref[h]
        vh = v_ref[h]
        # q @ k^T via dot_general contraction (no materialized K transpose).
        s = lax.dot_general(qh, kh, (((1,), (1,)), ((), ())),
                            preferred_element_type=jnp.float32)
        m_prev = m_ref[h]                # (tq, 1)
        l_prev = l_ref[h]
        m_new = jnp.maximum(m_prev, jnp.max(s, axis=-1, keepdims=True))
        alpha = jnp.exp(m_prev - m_new)
        # NOTE: on v6e/v7x the exp could run in bf16 to relieve the EUP slot;
        # kept f32 here for numerical parity with the reference.
        p = jnp.exp(s - m_new)           # (tq, tk) f32
        l_ref[h] = alpha * l_prev + jnp.sum(p, axis=-1, keepdims=True)
        m_ref[h] = m_new
        acc_ref[h] = alpha * acc_ref[h] + jnp.dot(
            p.astype(vh.dtype), vh, preferred_element_type=jnp.float32)
        return carry

    # Rolled loop over heads bounds live ranges (no 16-way unrolled body).
    lax.fori_loop(0, H, head_step, 0)

    @pl.when(ki == pl.num_programs(2) - 1)
    def _():
        # In-place normalization; plain per-head slab stores, no concatenate.
        for h in range(H):
            inv = pl.reciprocal(l_ref[h])          # exact; epilogue-only cost
            o_ref[h] = (acc_ref[h] * inv).astype(o_ref.dtype)


def flash_attention_pallas(qkv_hm, *, tq_target=512, tk_target=256):
    """softmax(q k^T / sqrt(D)) v over head-major qkv.

    qkv_hm: (3, B*T, H, S, D), i.e. the module's 'c (b t) h s d' layout.
    Returns (B*T, H, S, D).
    """
    _, BT, H, S, D = qkv_hm.shape
    scale = float(D) ** -0.5
    itemsize = qkv_hm.dtype.itemsize
    budget = int(0.75 * _vmem_limit_bytes())

    tq = _pick_tile(S, tq_target, 8)
    tk = _pick_tile(S, tk_target, 8)

    def footprint(tq_, tk_):
        io = 2 * H * (2 * tq_ + 2 * tk_) * D * itemsize   # q,o + k,v (x2 bufs)
        scratch = H * tq_ * (D + 2) * 4                   # f32 acc + m + l
        return io + scratch

    for _ in range(8):                                    # stay inside budget
        if footprint(tq, tk) <= budget:
            break
        new_tq = _pick_tile(S, max(tq // 2, 8), 8) if tq > 8 else tq
        new_tk = _pick_tile(S, max(tk // 2, 8), 8) if tk > 8 else tk
        if (new_tq, new_tk) == (tq, tk):
            break
        tq, tk = new_tq, new_tk

    grid = (BT, S // tq, S // tk)                         # kv reduction last
    kern = functools.partial(_flash_attn_kernel, scale=scale, num_heads=H)
    cost = pl.CostEstimate(
        flops=int(4 * BT * H * S * S * D),
        transcendentals=int(BT * H * S * S),
        bytes_accessed=int(4 * BT * H * S * D * itemsize))

    # TODO(synk): on v5e, sweeping pipeline_mode=pl.Buffered(3) on the k/v
    # streams can hide exposed DMA latency; left at the default depth here.
    q_spec = pl.BlockSpec((None, None, H, tq, D),
                          lambda bt, qi, ki: (0, bt, 0, qi, 0))
    k_spec = pl.BlockSpec((None, None, H, tk, D),
                          lambda bt, qi, ki: (1, bt, 0, ki, 0))
    v_spec = pl.BlockSpec((None, None, H, tk, D),
                          lambda bt, qi, ki: (2, bt, 0, ki, 0))
    o_spec = pl.BlockSpec((None, H, tq, D),
                          lambda bt, qi, ki: (bt, 0, qi, 0))

    return pl.pallas_call(
        kern,
        out_shape=jax.ShapeDtypeStruct((BT, H, S, D), qkv_hm.dtype),
        grid=grid,
        in_specs=[q_spec, k_spec, v_spec],
        out_specs=o_spec,
        scratch_shapes=[
            pltpu.VMEM((H, tq, 1), jnp.float32),          # running max / head
            pltpu.VMEM((H, tq, 1), jnp.float32),          # running sum / head
            pltpu.VMEM((H, tq, D), jnp.float32),          # running accumulator
        ],
        compiler_params=pltpu.CompilerParams(
            # BT and S//tq are the megacore-shardable axes (v7x: 2 TCs/chip).
            dimension_semantics=("parallel", "parallel", "arbitrary"),
            vmem_limit_bytes=_vmem_limit_bytes()),
        cost_estimate=cost,
    )(qkv_hm, qkv_hm, qkv_hm)


# ----------------------------------------------------------------------------
# Module-level forward
# ----------------------------------------------------------------------------
def open_sora_attention_forward(x, T, S, params, num_heads):
    """OpenSoraAttention.forward (cache=None, token_index=None, qk_norm=False,
    rope=None, eval / dropout=0).

    x: (B, N, C), N == T * S.
    params: 'w_qkv' (C, 3C) with columns ordered (c=3, h, d) -- the layout
            produced by nn.Linear(dim, 3*dim) + OpenSora's rearrange --
            'b_qkv' (3C,) or None, 'w_proj' (C, C), 'b_proj' (C,).
            Weights stored (in, out).
    """
    # TODO(synk): QKVCache update / token_index partial-input path, rotary
    # embeddings and qk_norm are not translated (cache=None, rope=None config).
    B, N, C = x.shape
    H = num_heads
    assert N == T * S and C % H == 0
    D = C // H
    assert params["w_qkv"].shape == (C, 3 * C)  # column layout must be (c,h,d)

    # qkv = self.qkv(x)   (bias stream omitted entirely when qkv_bias=False)
    qkv = linear_pallas(x.reshape(B * N, C), params["w_qkv"],
                        params.get("b_qkv"))

    # rearrange 'b (t s) (c h d) -> c (b t) h s d': one XLA transpose in HBM
    # into a head-major layout so every per-head tile in the attention kernel
    # is lane-aligned.
    qkv_hm = qkv.reshape(B, T, S, 3, H, D)
    qkv_hm = jnp.transpose(qkv_hm, (3, 0, 1, 4, 2, 5)).reshape(3, B * T, H, S, D)

    o_hm = flash_attention_pallas(qkv_hm)                 # (B*T, H, S, D)

    # rearrange '(b t) h s d -> b (t s) (h d)' and project (proj_drop no-op).
    o = jnp.transpose(o_hm, (0, 2, 1, 3)).reshape(B * N, C)
    o = linear_pallas(o, params["w_proj"], params["b_proj"])
    return o.reshape(B, N, C)


# ----------------------------------------------------------------------------
# Pure-JAX reference for correctness checking
# ----------------------------------------------------------------------------
def reference_forward(x, T, S, params, num_heads):
    B, N, C = x.shape
    H = num_heads
    D = C // H
    qkv = x @ params["w_qkv"]
    if params.get("b_qkv") is not None:
        qkv = qkv + params["b_qkv"]
    qkv = qkv.reshape(B, T, S, 3, H, D)
    qkv = jnp.transpose(qkv, (3, 0, 1, 4, 2, 5)).reshape(3, B * T, H, S, D)
    q, k, v = qkv[0], qkv[1], qkv[2]
    s = jnp.einsum("bhqd,bhkd->bhqk", q, k) * (D ** -0.5)
    p = jax.nn.softmax(s, axis=-1)
    o = jnp.einsum("bhqk,bhkd->bhqd", p, v)
    o = jnp.transpose(o, (0, 2, 1, 3)).reshape(B, T * S, C)
    return o @ params["w_proj"] + params["b_proj"]


# ----------------------------------------------------------------------------
if __name__ == "__main__":
    # Small shapes: B=2, T=2, S=8 -> N=16 tokens; heads=4, head_dim=32 -> C=128.
    B, T, S = 2, 2, 8
    num_heads, head_dim = 4, 32
    C = num_heads * head_dim
    N = T * S

    key = jax.random.PRNGKey(0)
    kx, kqkv, kpw, kpb = jax.random.split(key, 4)

    x = jax.random.normal(kx, (B, N, C), dtype=jnp.float32)

    # Module shapes: qkv = Linear(C, 3C, bias=False), proj = Linear(C, C).
    params = {
        "w_qkv": jax.random.normal(kqkv, (C, 3 * C), dtype=jnp.float32) * 0.05,
        "b_qkv": None,                                   # qkv_bias=False
        "w_proj": jax.random.normal(kpw, (C, C), dtype=jnp.float32) * 0.05,
        "b_proj": jax.random.normal(kpb, (C,), dtype=jnp.float32) * 0.05,
    }

    out = open_sora_attention_forward(x, T, S, params, num_heads)
    out = jax.block_until_ready(out)

    ref = reference_forward(x, T, S, params, num_heads)
    assert out.shape == (B, N, C)
    max_err = float(jnp.max(jnp.abs(out - ref)))
    assert jnp.allclose(out, ref, atol=2e-3, rtol=2e-3), (
        f"mismatch vs reference (max abs err {max_err:.2e})")

    # bf16 smoke run: the production configuration on v6e/v7x (kernels are
    # dtype-generic; softmax stats / accumulators stay f32 internally).
    x16 = x.astype(jnp.bfloat16)
    p16 = {k: (v.astype(jnp.bfloat16) if v is not None else None)
           for k, v in params.items()}
    out16 = jax.block_until_ready(
        open_sora_attention_forward(x16, T, S, p16, num_heads))
    assert out16.shape == (B, N, C)
    assert bool(jnp.all(jnp.isfinite(out16.astype(jnp.float32))))

    print("KERNEL_OK")
</pallas_src>

<mosaic_0001>
module attributes {stable_mosaic.version = 11 : i64} {
  func.func @_linear_fullk_kernel(%arg0: i32, %arg1: i32, %arg2: memref<32x128xf32, #tpu.memory_space<vmem>>, %arg3: memref<128x384xf32, #tpu.memory_space<vmem>>, %arg4: memref<32x384xf32, #tpu.memory_space<vmem>>) attributes {dimension_semantics = [#tpu.dimension_semantics<parallel>, #tpu.dimension_semantics<parallel>], iteration_bounds = array<i64: 1, 1>, scalar_prefetch = 0 : i64, scratch_operands = 0 : i64, tpu.core_type = #tpu.core_type<tc>, window_params = [{transform_indices = @transform_0, window_bounds = array<i64: 32, 128>}, {transform_indices = @transform_1, window_bounds = array<i64: 128, 384>}, {transform_indices = @transform_2, window_bounds = array<i64: 32, 384>}]} {
    %c0 = arith.constant 0 : index
    %c0_0 = arith.constant 0 : index
    %0 = vector.load %arg2[%c0, %c0_0] : memref<32x128xf32, #tpu.memory_space<vmem>>, vector<32x128xf32>
    %c0_1 = arith.constant 0 : index
    %c0_2 = arith.constant 0 : index
    %1 = vector.load %arg3[%c0_1, %c0_2] : memref<128x384xf32, #tpu.memory_space<vmem>>, vector<128x384xf32>
    %cst = arith.constant dense<0.000000e+00> : vector<32x384xf32>
    %2 = tpu.matmul %0, %1, %cst {dimension_numbers = #tpu.dot_dimension_numbers<[1], [0], [0], [1], [0, 0, 1, 1], [], []>} : vector<32x128xf32>, vector<128x384xf32>, vector<32x384xf32> -> vector<32x384xf32>
    %c0_3 = arith.constant 0 : index
    %c0_4 = arith.constant 0 : index
    %3 = vector.load %arg4[%c0_3, %c0_4] : memref<32x384xf32, #tpu.memory_space<vmem>>, vector<32x384xf32>
    tpu.vector_store %arg4[%c0_3, %c0_4], %2 {strides = array<i32>} : memref<32x384xf32, #tpu.memory_space<vmem>>, vector<32x384xf32>,
    return
  }
  func.func @transform_0(%arg0: i32, %arg1: i32) -> (i32, i32) {
    %c0_i32 = arith.constant 0 : i32
    %c0_i32_0 = arith.constant 0 : i32
    return %arg0, %c0_i32 : i32, i32
  }
  func.func @transform_1(%arg0: i32, %arg1: i32) -> (i32, i32) {
    %c0_i32 = arith.constant 0 : i32
    %c0_i32_0 = arith.constant 0 : i32
    return %c0_i32, %arg1 : i32, i32
  }
  func.func @transform_2(%arg0: i32, %arg1: i32) -> (i32, i32) {
    %c0_i32 = arith.constant 0 : i32
    return %arg0, %arg1 : i32, i32
  }
}

</mosaic_0001>

<llo_original>
// kernel: tpu_custom_call.1
$region0: #{tpu_custom_call.1}
  #allocation0 [shape = 'u32[]', space=smem, size = 0x4, offset = 0x4, fixed_abs, tag = 'smem constant byte address 0x4 - core index']
  #allocation1 [shape = 'u32[72,128]{1,0:T(1,128)}', space=vmem, size = 0x9000, scoped, tag = 'internal scratch']
  %s0 = inlined_call_operand.hbm [shape: f32[32,128], index: 0, kind: input, shape index: {}]
  %s1 = inlined_call_operand.hbm [shape: f32[128,384], index: 1, kind: input, shape index: {}]
  %s2 = inlined_call_operand.hbm [shape: f32[32,384], index: 2, kind: output, shape index: {}]
  %s3 = sld [smem:[#allocation0]]
  $region26: #{tpu_custom_call.1} parent=0
    _
  %s5 = ssub.s32 1, %s3
  %s6 = scalar_select 0, %s5, %s3
  $region1: #{tpu_custom_call.1} parent=0
    #allocation2 [shape = 'u8[16384]{0}', space=vmem, size = 0x4000, scoped, tag = 'input window, operand 0, single buffered']
    #allocation3 [shape = 's32[1]{0}', space=sflag, size = 0x4, scoped, tag = 'scoped memory for tpu_custom_call.1']
    #allocation4 [shape = 's32[1]{0}', space=sflag, size = 0x4, scoped, tag = 'scoped memory for tpu_custom_call.1']
    #allocation5 [shape = 'u8[196608]{0}', space=vmem, size = 0x30000, scoped, tag = 'input window, operand 1, single buffered']
    #allocation6 [shape = 's32[1]{0}', space=sflag, size = 0x4, scoped, tag = 'scoped memory for tpu_custom_call.1']
    #allocation7 [shape = 'u8[49152]{0}', space=vmem, size = 0xc000, scoped, tag = 'output window, operand 0, single buffered']
    %7 = vsyncpa [#allocation3], 0
    %8 = vsyncpa [#allocation6], 0
    %9 = vsyncpa [#allocation4], 0
    // Predicated region
    $region2: #{tpu_custom_call.1} parent=1 // pred_check
      _
    $region3: #{tpu_custom_call.1} parent=1 // pred_check_branch
      %11 = sbr.rel (0) target = $region5
    $region4: #{tpu_custom_call.1} parent=1 // pred_region
      %13 = vsyncadd [#allocation3], 0
      %s14 = sshll.u32 %s0, 4
      %s15 = int_to_ptr.hbm [resolvable:$true] %s14
      %s16 = sshll.u32 [#allocation2], 4
      %s17 = int_to_ptr.vmem [resolvable:$true] %s16
      %22 = dma.hbm_to_vmem [thread:$0]  %s15, 512, %s17, [#allocation3], 128, 128, 8
    $region5: #{tpu_custom_call.1} parent=1 // pred_fallthru
      _
    // Predicated region
    $region6: #{tpu_custom_call.1} parent=1 // pred_check
      _
    $region7: #{tpu_custom_call.1} parent=1 // pred_check_branch
      %24 = sbr.rel (0) target = $region9
    $region8: #{tpu_custom_call.1} parent=1 // pred_region
      %26 = vsyncadd [#allocation6], 0
      %s27 = sshll.u32 %s1, 4
      %s28 = int_to_ptr.hbm [resolvable:$true] %s27
      %s29 = sshll.u32 [#allocation5], 4
      %s30 = int_to_ptr.vmem [resolvable:$true] %s29
      %35 = dma.hbm_to_vmem [thread:$0]  %s28, 6144, %s30, [#allocation6], 384, 384, 24
    $region9: #{tpu_custom_call.1} parent=1 // pred_fallthru
      _
    // Predicated region
    $region10: #{tpu_custom_call.1} parent=1 // pred_check
      _
    $region11: #{tpu_custom_call.1} parent=1 // pred_check_branch
      %37 = sbr.rel (0) target = $region13
    $region12: #{tpu_custom_call.1} parent=1 // pred_region
      %39 = dma.done [#allocation3], 512
    $region13: #{tpu_custom_call.1} parent=1 // pred_fallthru
      _
    // Predicated region
    $region14: #{tpu_custom_call.1} parent=1 // pred_check
      _
    $region15: #{tpu_custom_call.1} parent=1 // pred_check_branch
      %41 = sbr.rel (0) target = $region17
    $region16: #{tpu_custom_call.1} parent=1 // pred_region
      %43 = dma.done [#allocation6], 6144
    $region17: #{tpu_custom_call.1} parent=1 // pred_fallthru
      _
    %v44 = vld [vmem:[#allocation2] sm:$0xff]
    %v45 = vld [vmem:[#allocation2 + $0x8] sm:$0xff]
    %v46 = vld [vmem:[#allocation2 + $0x10] sm:$0xff]
    %v47 = vld [vmem:[#allocation2 + $0x18] sm:$0xff]
    %v48 = vld [vmem:[#allocation5] sm:$0xff]
    %v49 = vld [vmem:[#allocation5 + $0x8] sm:$0xff]
    %v50 = vld [vmem:[#allocation5 + $0x10] sm:$0xff]
    %v51 = vld [vmem:[#allocation5 + $0x18] sm:$0xff]
    %v52 = vld [vmem:[#allocation5 + $0x20] sm:$0xff]
    %v53 = vld [vmem:[#allocation5 + $0x28] sm:$0xff]
    %v54 = vld [vmem:[#allocation5 + $0x30] sm:$0xff]
    %v55 = vld [vmem:[#allocation5 + $0x38] sm:$0xff]
    %v56 = vld [vmem:[#allocation5 + $0x40] sm:$0xff]
    %v57 = vld [vmem:[#allocation5 + $0x48] sm:$0xff]
    %v58 = vld [vmem:[#allocation5 + $0x50] sm:$0xff]
    %v59 = vld [vmem:[#allocation5 + $0x58] sm:$0xff]
    %v60 = vld [vmem:[#allocation5 + $0x60] sm:$0xff]
    %v61 = vld [vmem:[#allocation5 + $0x68] sm:$0xff]
    %v62 = vld [vmem:[#allocation5 + $0x70] sm:$0xff]
    %v63 = vld [vmem:[#allocation5 + $0x78] sm:$0xff]
    %v64 = vld [vmem:[#allocation5 + $0x80] sm:$0xff]
    %v65 = vld [vmem:[#allocation5 + $0x88] sm:$0xff]
    %v66 = vld [vmem:[#allocation5 + $0x90] sm:$0xff]
    %v67 = vld [vmem:[#allocation5 + $0x98] sm:$0xff]
    %v68 = vld [vmem:[#allocation5 + $0xa0] sm:$0xff]
    %v69 = vld [vmem:[#allocation5 + $0xa8] sm:$0xff]
    %v70 = vld [vmem:[#allocation5 + $0xb0] sm:$0xff]
    %v71 = vld [vmem:[#allocation5 + $0xb8] sm:$0xff]
    %v72 = vld [vmem:[#allocation5 + $0xc0] sm:$0xff]
    %v73 = vld [vmem:[#allocation5 + $0xc8] sm:$0xff]
    %v74 = vld [vmem:[#allocation5 + $0xd0] sm:$0xff]
    %v75 = vld [vmem:[#allocation5 + $0xd8] sm:$0xff]
    %v76 = vld [vmem:[#allocation5 + $0xe0] sm:$0xff]
    %v77 = vld [vmem:[#allocation5 + $0xe8] sm:$0xff]
    %v78 = vld [vmem:[#allocation5 + $0xf0] sm:$0xff]
    %v79 = vld [vmem:[#allocation5 + $0xf8] sm:$0xff]
    %v80 = vld [vmem:[#allocation5 + $0x100] sm:$0xff]
    %v81 = vld [vmem:[#allocation5 + $0x108] sm:$0xff]
    %v82 = vld [vmem:[#allocation5 + $0x110] sm:$0xff]
    %v83 = vld [vmem:[#allocation5 + $0x118] sm:$0xff]
    %v84 = vld [vmem:[#allocation5 + $0x120] sm:$0xff]
    %v85 = vld [vmem:[#allocation5 + $0x128] sm:$0xff]
    %v86 = vld [vmem:[#allocation5 + $0x130] sm:$0xff]
    %v87 = vld [vmem:[#allocation5 + $0x138] sm:$0xff]
    %v88 = vld [vmem:[#allocation5 + $0x140] sm:$0xff]
    %v89 = vld [vmem:[#allocation5 + $0x148] sm:$0xff]
    %v90 = vld [vmem:[#allocation5 + $0x150] sm:$0xff]
    %v91 = vld [vmem:[#allocation5 + $0x158] sm:$0xff]
    %v92 = vld [vmem:[#allocation5 + $0x160] sm:$0xff]
    %v93 = vld [vmem:[#allocation5 + $0x168] sm:$0xff]
    %v94 = vld [vmem:[#allocation5 + $0x170] sm:$0xff]
    %v95 = vld [vmem:[#allocation5 + $0x178] sm:$0xff]
    %96 = vmatpush.msra.mxu0 %v93
    %97 = vmatpush.msra.mxu0 %v90
    %98 = vmatpush.msra.mxu0 %v87
    %99 = vmatpush.msra.mxu0 %v84
    %100 = vmatpush.msra.mxu0 %v81
    %101 = vmatpush.msra.mxu0 %v78
    %102 = vmatpush.msra.mxu0 %v75
    %103 = vmatpush.msra.mxu0 %v72
    %104 = vmatpush.msra.mxu0 %v69
    %105 = vmatpush.msra.mxu0 %v66
    %106 = vmatpush.msra.mxu0 %v63
    %107 = vmatpush.msra.mxu0 %v60
    %108 = vmatpush.msra.mxu0 %v57
    %109 = vmatpush.msra.mxu0 %v54
    %110 = vmatpush.msra.mxu0 %v51
    %111 = vmatpush.msra.mxu0 %v48
    %112 = vmatmul.f32.gmra.mxu0 %v44
    %v113 = vpop.f32.mrf.mxu0
    %v114 = vadd.f32 0.0, %v113
    %115 = vmatmul.f32.gmra.mxu0 %v45
    %v116 = vpop.f32.mrf.mxu0
    %v117 = vadd.f32 0.0, %v116
    %118 = vmatmul.f32.gmra.mxu0 %v46
    %v119 = vpop.f32.mrf.mxu0
    %v120 = vadd.f32 0.0, %v119
    %121 = vmatmul.f32.gmra.mxu0 %v47
    %v122 = vpop.f32.mrf.mxu0
    %v123 = vadd.f32 0.0, %v122
    %124 = vdwg.mxu0
    %125 = vmatpush.msra.mxu0 %v94
    %126 = vmatpush.msra.mxu0 %v91
    %127 = vmatpush.msra.mxu0 %v88
    %128 = vmatpush.msra.mxu0 %v85
    %129 = vmatpush.msra.mxu0 %v82
    %130 = vmatpush.msra.mxu0 %v79
    %131 = vmatpush.msra.mxu0 %v76
    %132 = vmatpush.msra.mxu0 %v73
    %133 = vmatpush.msra.mxu0 %v70
    %134 = vmatpush.msra.mxu0 %v67
    %135 = vmatpush.msra.mxu0 %v64
    %136 = vmatpush.msra.mxu0 %v61
    %137 = vmatpush.msra.mxu0 %v58
    %138 = vmatpush.msra.mxu0 %v55
    %139 = vmatpush.msra.mxu0 %v52
    %140 = vmatpush.msra.mxu0 %v49
    %141 = vmatmul.f32.gmra.mxu0 %v44
    %v142 = vpop.f32.mrf.mxu0
    %v143 = vadd.f32 0.0, %v142
    %144 = vmatmul.f32.gmra.mxu0 %v45
    %v145 = vpop.f32.mrf.mxu0
    %v146 = vadd.f32 0.0, %v145
    %147 = vmatmul.f32.gmra.mxu0 %v46
    %v148 = vpop.f32.mrf.mxu0
    %v149 = vadd.f32 0.0, %v148
    %150 = vmatmul.f32.gmra.mxu0 %v47
    %v151 = vpop.f32.mrf.mxu0
    %v152 = vadd.f32 0.0, %v151
    %153 = vdwg.mxu0
    %154 = vmatpush.msra.mxu0 %v95
    %155 = vmatpush.msra.mxu0 %v92
    %156 = vmatpush.msra.mxu0 %v89
    %157 = vmatpush.msra.mxu0 %v86
    %158 = vmatpush.msra.mxu0 %v83
    %159 = vmatpush.msra.mxu0 %v80
    %160 = vmatpush.msra.mxu0 %v77
    %161 = vmatpush.msra.mxu0 %v74
    %162 = vmatpush.msra.mxu0 %v71
    %163 = vmatpush.msra.mxu0 %v68
    %164 = vmatpush.msra.mxu0 %v65
    %165 = vmatpush.msra.mxu0 %v62
    %166 = vmatpush.msra.mxu0 %v59
    %167 = vmatpush.msra.mxu0 %v56
    %168 = vmatpush.msra.mxu0 %v53
    %169 = vmatpush.msra.mxu0 %v50
    %170 = vmatmul.f32.gmra.mxu0 %v44
    %v171 = vpop.f32.mrf.mxu0
    %v172 = vadd.f32 0.0, %v171
    %173 = vmatmul.f32.gmra.mxu0 %v45
    %v174 = vpop.f32.mrf.mxu0
    %v175 = vadd.f32 0.0, %v174
    %176 = vmatmul.f32.gmra.mxu0 %v46
    %v177 = vpop.f32.mrf.mxu0
    %v178 = vadd.f32 0.0, %v177
    %179 = vmatmul.f32.gmra.mxu0 %v47
    %v180 = vpop.f32.mrf.mxu0
    %v181 = vadd.f32 0.0, %v180
    %182 = vdwg.mxu0
    %183 = vst [vmem:[#allocation7] sm:$0xff] %v114
    %184 = vst [vmem:[#allocation7 + $0x8] sm:$0xff] %v143
    %185 = vst [vmem:[#allocation7 + $0x10] sm:$0xff] %v172
    %186 = vst [vmem:[#allocation7 + $0x18] sm:$0xff] %v117
    %187 = vst [vmem:[#allocation7 + $0x20] sm:$0xff] %v146
    %188 = vst [vmem:[#allocation7 + $0x28] sm:$0xff] %v175
    %189 = vst [vmem:[#allocation7 + $0x30] sm:$0xff] %v120
    %190 = vst [vmem:[#allocation7 + $0x38] sm:$0xff] %v149
    %191 = vst [vmem:[#allocation7 + $0x40] sm:$0xff] %v178
    %192 = vst [vmem:[#allocation7 + $0x48] sm:$0xff] %v123
    %193 = vst [vmem:[#allocation7 + $0x50] sm:$0xff] %v152
    %194 = vst [vmem:[#allocation7 + $0x58] sm:$0xff] %v181
    // Predicated region
    $region18: #{tpu_custom_call.1} parent=1 // pred_check
      _
    $region19: #{tpu_custom_call.1} parent=1 // pred_check_branch
      %196 = sbr.rel (0) target = $region21
    $region20: #{tpu_custom_call.1} parent=1 // pred_region
      %198 = vsyncadd [#allocation4], 0
      %s199 = sshll.u32 [#allocation7], 4
      %s200 = int_to_ptr.vmem [resolvable:$true] %s199
      %s201 = sshll.u32 %s2, 4
      %s202 = int_to_ptr.hbm [resolvable:$true] %s201
      %207 = dma.vmem_to_hbm [thread:$0]  %s200, 1536, %s202, [#allocation4], 384, 384, 24
    $region21: #{tpu_custom_call.1} parent=1 // pred_fallthru
      _
    // Predicated region
    $region22: #{tpu_custom_call.1} parent=1 // pred_check
      _
    $region23: #{tpu_custom_call.1} parent=1 // pred_check_branch
      %209 = sbr.rel (0) target = $region25
    $region24: #{tpu_custom_call.1} parent=1 // pred_region
      %211 = dma.done [#allocation4], 1536
    $region25: #{tpu_custom_call.1} parent=1 // pred_fallthru
      _
    %212 = vsyncpa [#allocation3], 1
    %213 = vsyncpa [#allocation6], 1
    %214 = vsyncpa [#allocation4], 1

</llo_original>
